<compile_context>
chip_gen: v7x
topology: tpu7x:2x2x1
jax: 0.10.0
libtpu: 0.0.40
codegen_flags: <defaults>
</compile_context>

<pallas_src>
import functools

import jax
import jax.numpy as jnp
import numpy as np
from jax.experimental import pallas as pl
from jax.experimental.pallas import tpu as pltpu

_BN_EPS = 1e-5
_LANE = 128        # TPU lane width
_SUBLANE = 8       # f32 sublane tile


def _round_up(a, m):
    return (a + m - 1) // m * m


# --------------------------- static tap geometry ----------------------------

def _tap_shifts(W, lane_len):
    """Lane-roll amount per tap (t = ky*3 + kx) of a 3x3 / pad=1 conv."""
    return tuple((-(oy * W + ox)) % lane_len
                 for oy in (-1, 0, 1) for ox in (-1, 0, 1))


def _tap_masks_np(H, W, hw_pad, nb):
    """Per-tap border masks as {0,1} float32, shape (9, nb*hw_pad).

    Built with numpy at trace time (H, W are static) so the kernel never
    computes iota / mod / compares.  Mask rows also zero the per-image lane
    padding, which (together with the row/col conditions) guarantees lane
    rolls never leak data across adjacent images in a folded batch block.
    """
    hw = H * W
    q = np.arange(hw_pad)
    col = q % W
    rows = []
    for oy in (-1, 0, 1):
        for ox in (-1, 0, 1):
            m = q < hw
            if oy == 1:
                m = m & (q < (H - 1) * W)
            elif oy == -1:
                m = m & (q >= W)
            if ox == 1:
                m = m & (col < (W - 1))
            elif ox == -1:
                m = m & (col >= 1)
            rows.append(m)
    masks = np.stack(rows, axis=0).astype(np.float32)   # (9, hw_pad)
    return np.tile(masks, (1, nb))                       # (9, nb*hw_pad)


# --------------------------------- kernel -----------------------------------

def _block2_kernel(shifts, apply_mask,
                   x_ref, skip_ref, mask_ref,
                   w1_ref, b1_ref, w2_ref, b2_ref, w3_ref, b3_ref,
                   o_ref):
    """Fused conv1 -> conv2 -> cat(skip, conv2) -> conv3 for one lane block."""
    masks_all = mask_ref[...]                                   # (9, Lb) f32
    masks = [masks_all[t:t + 1, :] if apply_mask[t] else None for t in range(9)]

    def tap_stack(a):
        """(C, Lb) f32 -> (9*C, Lb) bf16.

        Rolled + masked taps stacked along the contraction axis (pure f32
        tile stacking, C is a multiple of 8), cast to bf16 once so each conv
        is a single bf16 MXU matmul with f32 accumulation.
        """
        pieces = []
        for t, shift in enumerate(shifts):
            r = a if shift == 0 else pltpu.roll(a, shift, axis=1)
            if masks[t] is not None:
                r = r * masks[t]
            pieces.append(r)
        return jnp.concatenate(pieces, axis=0).astype(jnp.bfloat16)

    def conv(a, w_ref, b_ref):
        acc = jnp.dot(w_ref[...], tap_stack(a),
                      preferred_element_type=jnp.float32)       # one matmul
        return jnp.maximum(acc + b_ref[...], 0.0)               # folded BN+ReLU

    x = x_ref[...].astype(jnp.float32)                          # (Cin_p,  Lb)
    skip = skip_ref[...].astype(jnp.float32)                    # (Cskip_p,Lb)

    c1 = conv(x, w1_ref, b1_ref)                                # (Cmid_p, Lb)
    c2 = conv(c1, w2_ref, b2_ref)                               # (Cmid_p, Lb)
    # torch.cat((cat(x_pass,1), conv2_out), 1) -> sublane concat in VMEM,
    # consumed by the un-split conv3 weights (single matmul, K = 9*(Cs+Cm)).
    x3 = jnp.concatenate([skip, c2], axis=0)
    o_ref[...] = conv(x3, w3_ref, b3_ref).astype(o_ref.dtype)


# ------------------------------ host wrapper --------------------------------

def _to_lane_major(x_nchw, c_pad, hw_pad):
    """(N,C,H,W) -> (c_pad, N*hw_pad) bf16: channels on sublanes, images laid
    back-to-back on the lane axis (each padded to hw_pad lanes)."""
    N, C, H, W = x_nchw.shape
    hw = H * W
    x2 = x_nchw.reshape(N, C, hw)
    if hw_pad != hw:
        x2 = jnp.pad(x2, ((0, 0), (0, 0), (0, hw_pad - hw)))
    x2 = jnp.transpose(x2, (1, 0, 2)).reshape(C, N * hw_pad)
    if c_pad != C:
        x2 = jnp.pad(x2, ((0, c_pad - C), (0, 0)))
    return x2.astype(jnp.bfloat16)


def _pick_nb(N, hw_pad):
    """Images folded into the lane axis per grid step (amortizes step overhead
    and the MXU weight push) while keeping >= 2 grid steps when N >= 2 so both
    v7x TensorCores get work."""
    nb = max(1, min(N, 2048 // hw_pad)) if hw_pad <= 2048 else 1
    while N % nb:
        nb -= 1
    if N >= 2 and N // nb < 2:
        nb = max(1, N // 2)
        while N % nb:
            nb -= 1
    return nb


@jax.jit
def block2_forward_nchw(params, x_nchw, *x_pass_nchw):
    """Matches Block2.forward: x, *x_pass are NCHW; returns NCHW."""
    N, Cin, H, W = x_nchw.shape
    hw = H * W
    skip = (x_pass_nchw[0] if len(x_pass_nchw) == 1
            else jnp.concatenate(x_pass_nchw, axis=1))          # torch.cat(x_pass,1)
    Cskip = skip.shape[1]

    w1, b1 = params["conv1"]["w_stk"], params["conv1"]["bias"]
    w2, b2 = params["conv2"]["w_stk"], params["conv2"]["bias"]
    w3, b3 = params["conv3"]["w_stk"], params["conv3"]["bias"]
    cin_pad = w1.shape[1] // 9
    cmid_pad = w1.shape[0]
    cskip_pad = w3.shape[1] // 9 - cmid_pad
    cout = w3.shape[0]
    assert cin_pad >= Cin and cskip_pad >= Cskip

    hw_pad = _round_up(hw, _LANE)         # lane-dense stores for any H, W
    nb = _pick_nb(N, hw_pad)
    grid = N // nb
    lb = nb * hw_pad                      # lane-block width (multiple of 128)

    x_b = _to_lane_major(x_nchw, cin_pad, hw_pad)       # bf16: half DMA bytes
    s_b = _to_lane_major(skip, cskip_pad, hw_pad)

    shifts = _tap_shifts(W, lb)
    mask_np = _tap_masks_np(H, W, hw_pad, nb)
    apply_mask = tuple(bool(not np.all(mask_np[t] == 1.0)) for t in range(9))
    mask_arr = jnp.asarray(mask_np)                      # (9, lb) f32 constant

    kernel = functools.partial(_block2_kernel, shifts, apply_mask)
    out_flat = pl.pallas_call(
        kernel,
        out_shape=jax.ShapeDtypeStruct((cout, N * hw_pad), x_nchw.dtype),
        grid=(grid,),
        in_specs=[
            pl.BlockSpec((cin_pad, lb), lambda g: (0, g)),
            pl.BlockSpec((cskip_pad, lb), lambda g: (0, g)),
            pl.BlockSpec(mask_arr.shape, lambda g: (0, 0)),
            pl.BlockSpec(w1.shape, lambda g: (0, 0)),
            pl.BlockSpec(b1.shape, lambda g: (0, 0)),
            pl.BlockSpec(w2.shape, lambda g: (0, 0)),
            pl.BlockSpec(b2.shape, lambda g: (0, 0)),
            pl.BlockSpec(w3.shape, lambda g: (0, 0)),
            pl.BlockSpec(b3.shape, lambda g: (0, 0)),
        ],
        out_specs=pl.BlockSpec((cout, lb), lambda g: (0, g)),
        compiler_params=pltpu.CompilerParams(
            dimension_semantics=("parallel",)),
    )(x_b, s_b, mask_arr, w1, b1, w2, b2, w3, b3)

    out = out_flat.reshape(cout, N, hw_pad).transpose(1, 0, 2)[:, :, :hw]
    return out.reshape(N, cout, H, W)


# --------------------------- parameter building -----------------------------

def _make_conv_bn(key, cin, cout, eps=_BN_EPS):
    """Deterministic synthetic Conv2d(3x3)+BatchNorm2d params, BN folded."""
    k_w, k_b, k_g, k_be, k_m, k_v = jax.random.split(key, 6)
    w = 0.1 * jax.random.normal(k_w, (cout, cin, 3, 3), jnp.float32)
    conv_b = 0.1 * jax.random.normal(k_b, (cout,), jnp.float32)
    gamma = 1.0 + 0.1 * jax.random.normal(k_g, (cout,), jnp.float32)
    beta = 0.1 * jax.random.normal(k_be, (cout,), jnp.float32)
    mean = 0.1 * jax.random.normal(k_m, (cout,), jnp.float32)
    var = jnp.abs(jax.random.normal(k_v, (cout,), jnp.float32)) + 0.5

    # Fold BN (inference) + conv bias: y = (sum w*x) * s + bias.
    scale = gamma / jnp.sqrt(var + eps)
    bias = beta + (conv_b - mean) * scale
    w_scaled = w * scale[:, None, None, None]
    raw = {"w": w, "b": conv_b, "gamma": gamma, "beta": beta,
           "mean": mean, "var": var}
    return raw, w_scaled, bias


def _stack_weights(w_scaled, groups, cout_pad):
    """(Cout, Cin_tot, 3, 3) f32 -> (cout_pad, 9*sum(pad)) bf16 tap-stacked.

    `groups` is a list of (real_channels, padded_channels) describing the
    input-channel layout of the kernel's stacked operand (zero columns for the
    padded rows), in tap order t = ky*3 + kx.
    """
    cout = w_scaled.shape[0]
    taps = []
    for ky in range(3):
        for kx in range(3):
            wt = w_scaled[:, :, ky, kx]                       # (cout, cin_tot)
            cols, off = [], 0
            for c, p in groups:
                cols.append(wt[:, off:off + c])
                if p > c:
                    cols.append(jnp.zeros((cout, p - c), wt.dtype))
                off += c
            taps.append(jnp.concatenate(cols, axis=1))
    w_stk = jnp.concatenate(taps, axis=1)
    if cout_pad > cout:
        w_stk = jnp.pad(w_stk, ((0, cout_pad - cout), (0, 0)))
    return w_stk.astype(jnp.bfloat16)


def _pad_bias(bias, cout_pad):
    cout = bias.shape[0]
    if cout_pad > cout:
        bias = jnp.pad(bias, (0, cout_pad - cout))
    return bias.reshape(cout_pad, 1).astype(jnp.float32)


def init_block2_params(key, in_channels, out_channels, skip_outchannels):
    k1, k2, k3 = jax.random.split(key, 3)
    cin_p = _round_up(in_channels, _SUBLANE)
    cmid_p = _round_up(out_channels, _SUBLANE)
    cskip_p = _round_up(skip_outchannels, _SUBLANE)

    raw1, w1s, b1 = _make_conv_bn(k1, in_channels, out_channels)
    raw2, w2s, b2 = _make_conv_bn(k2, out_channels, out_channels)
    raw3, w3s, b3 = _make_conv_bn(k3, out_channels + skip_outchannels,
                                  out_channels)

    return {
        "conv1": {"w_stk": _stack_weights(w1s, [(in_channels, cin_p)], cmid_p),
                  "bias": _pad_bias(b1, cmid_p), "raw": raw1},
        "conv2": {"w_stk": _stack_weights(w2s, [(out_channels, cmid_p)], cmid_p),
                  "bias": _pad_bias(b2, cmid_p), "raw": raw2},
        # conv3 input-channel order is [skips..., conv2_out] (matches torch.cat).
        "conv3": {"w_stk": _stack_weights(
                      w3s,
                      [(skip_outchannels, cskip_p), (out_channels, cmid_p)],
                      out_channels),
                  "bias": _pad_bias(b3, out_channels), "raw": raw3},
    }


# ----------------------- plain-XLA reference (f32) --------------------------

def _reference_conv_block(x, raw, eps=_BN_EPS):
    y = jax.lax.conv_general_dilated(
        x, raw["w"], window_strides=(1, 1), padding=((1, 1), (1, 1)),
        dimension_numbers=("NCHW", "OIHW", "NCHW"),
        precision=jax.lax.Precision.HIGHEST)
    y = y + raw["b"][None, :, None, None]
    inv = (raw["gamma"] / jnp.sqrt(raw["var"] + eps))[None, :, None, None]
    y = (y - raw["mean"][None, :, None, None]) * inv + raw["beta"][None, :, None, None]
    return jnp.maximum(y, 0.0)


def block2_reference_nchw(params, x, *x_pass):
    c1 = _reference_conv_block(x, params["conv1"]["raw"])
    c2 = _reference_conv_block(c1, params["conv2"]["raw"])
    cat = jnp.concatenate(list(x_pass) + [c2], axis=1)
    return _reference_conv_block(cat, params["conv3"]["raw"])


if __name__ == "__main__":
    key = jax.random.PRNGKey(0)
    k_p, k_x, k_s = jax.random.split(key, 3)

    in_channels, out_channels, skip_outchannels = 4, 8, 4
    N, H, W = 2, 16, 16

    params = init_block2_params(k_p, in_channels, out_channels, skip_outchannels)

    x = jax.random.normal(k_x, (N, in_channels, H, W), jnp.float32)          # NCHW
    skip = jax.random.normal(k_s, (N, skip_outchannels, H, W), jnp.float32)  # NCHW

    out = jax.block_until_ready(block2_forward_nchw(params, x, skip))
    assert out.shape == (N, out_channels, H, W), out.shape
    out_np = np.asarray(out)
    assert np.all(np.isfinite(out_np))

    # Sanity check vs. a plain-XLA f32 reference.  The kernel uses bf16 MXU
    # inputs (and bf16 HBM activations) with f32 accumulation; expected error
    # is ~1e-2 relative, checked at a loose 1e-1 tolerance.
    ref_np = np.asarray(block2_reference_nchw(params, x, skip))
    if not np.allclose(out_np, ref_np, rtol=1e-1, atol=1e-1):
        raise AssertionError(
            "kernel mismatch vs reference: max abs err = "
            f"{float(np.max(np.abs(out_np - ref_np)))}")
    print("KERNEL_OK")
</pallas_src>

<mosaic_0001>
module attributes {stable_mosaic.version = 11 : i64} {
  func.func @_block2_kernel(%arg0: i32, %arg1: memref<8x256xbf16, #tpu.memory_space<vmem>>, %arg2: memref<8x256xbf16, #tpu.memory_space<vmem>>, %arg3: memref<9x256xf32, #tpu.memory_space<vmem>>, %arg4: memref<8x72xbf16, #tpu.memory_space<vmem>>, %arg5: memref<8x1xf32, #tpu.memory_space<vmem>>, %arg6: memref<8x72xbf16, #tpu.memory_space<vmem>>, %arg7: memref<8x1xf32, #tpu.memory_space<vmem>>, %arg8: memref<8x144xbf16, #tpu.memory_space<vmem>>, %arg9: memref<8x1xf32, #tpu.memory_space<vmem>>, %arg10: memref<8x256xf32, #tpu.memory_space<vmem>>) attributes {dimension_semantics = [#tpu.dimension_semantics<parallel>], iteration_bounds = array<i64: 2>, scalar_prefetch = 0 : i64, scratch_operands = 0 : i64, tpu.core_type = #tpu.core_type<tc>, window_params = [{transform_indices = @transform_0, window_bounds = array<i64: 8, 256>}, {transform_indices = @transform_1, window_bounds = array<i64: 8, 256>}, {pipeline_mode = #tpu.pipeline_mode<synchronous>, transform_indices = @transform_2, window_bounds = array<i64: 9, 256>}, {pipeline_mode = #tpu.pipeline_mode<synchronous>, transform_indices = @transform_3, window_bounds = array<i64: 8, 72>}, {pipeline_mode = #tpu.pipeline_mode<synchronous>, transform_indices = @transform_4, window_bounds = array<i64: 8, 1>}, {pipeline_mode = #tpu.pipeline_mode<synchronous>, transform_indices = @transform_5, window_bounds = array<i64: 8, 72>}, {pipeline_mode = #tpu.pipeline_mode<synchronous>, transform_indices = @transform_6, window_bounds = array<i64: 8, 1>}, {pipeline_mode = #tpu.pipeline_mode<synchronous>, transform_indices = @transform_7, window_bounds = array<i64: 8, 144>}, {pipeline_mode = #tpu.pipeline_mode<synchronous>, transform_indices = @transform_8, window_bounds = array<i64: 8, 1>}, {transform_indices = @transform_9, window_bounds = array<i64: 8, 256>}]} {
    %c0 = arith.constant 0 : index
    %c0_0 = arith.constant 0 : index
    %0 = vector.load %arg3[%c0, %c0_0] : memref<9x256xf32, #tpu.memory_space<vmem>>, vector<9x256xf32>
    %1 = vector.extract_strided_slice %0 {offsets = [0, 0], sizes = [1, 256], strides = [1, 1]} : vector<9x256xf32> to vector<1x256xf32>
    %2 = vector.extract_strided_slice %0 {offsets = [1, 0], sizes = [1, 256], strides = [1, 1]} : vector<9x256xf32> to vector<1x256xf32>
    %3 = vector.extract_strided_slice %0 {offsets = [2, 0], sizes = [1, 256], strides = [1, 1]} : vector<9x256xf32> to vector<1x256xf32>
    %4 = vector.extract_strided_slice %0 {offsets = [3, 0], sizes = [1, 256], strides = [1, 1]} : vector<9x256xf32> to vector<1x256xf32>
    %5 = vector.extract_strided_slice %0 {offsets = [5, 0], sizes = [1, 256], strides = [1, 1]} : vector<9x256xf32> to vector<1x256xf32>
    %6 = vector.extract_strided_slice %0 {offsets = [6, 0], sizes = [1, 256], strides = [1, 1]} : vector<9x256xf32> to vector<1x256xf32>
    %7 = vector.extract_strided_slice %0 {offsets = [7, 0], sizes = [1, 256], strides = [1, 1]} : vector<9x256xf32> to vector<1x256xf32>
    %8 = vector.extract_strided_slice %0 {offsets = [8, 0], sizes = [1, 256], strides = [1, 1]} : vector<9x256xf32> to vector<1x256xf32>
    %c0_1 = arith.constant 0 : index
    %c0_2 = arith.constant 0 : index
    %9 = vector.load %arg1[%c0_1, %c0_2] : memref<8x256xbf16, #tpu.memory_space<vmem>>, vector<8x256xbf16>
    %10 = arith.extf %9 : vector<8x256xbf16> to vector<8x256xf32>
    %c0_3 = arith.constant 0 : index
    %c0_4 = arith.constant 0 : index
    %11 = vector.load %arg2[%c0_3, %c0_4] : memref<8x256xbf16, #tpu.memory_space<vmem>>, vector<8x256xbf16>
    %12 = arith.extf %11 : vector<8x256xbf16> to vector<8x256xf32>
    %c0_5 = arith.constant 0 : index
    %c0_6 = arith.constant 0 : index
    %13 = vector.load %arg4[%c0_5, %c0_6] : memref<8x72xbf16, #tpu.memory_space<vmem>>, vector<8x72xbf16>
    %c17_i32 = arith.constant 17 : i32
    %14 = tpu.dynamic_rotate %10 by %c17_i32 dim 1 : vector<8x256xf32>, i32 -> vector<8x256xf32>
    %15 = vector.broadcast %1 : vector<1x256xf32> to vector<8x256xf32>
    %16 = arith.mulf %14, %15 : vector<8x256xf32>
    %c16_i32 = arith.constant 16 : i32
    %17 = tpu.dynamic_rotate %10 by %c16_i32 dim 1 : vector<8x256xf32>, i32 -> vector<8x256xf32>
    %18 = vector.broadcast %2 : vector<1x256xf32> to vector<8x256xf32>
    %19 = arith.mulf %17, %18 : vector<8x256xf32>
    %c15_i32 = arith.constant 15 : i32
    %20 = tpu.dynamic_rotate %10 by %c15_i32 dim 1 : vector<8x256xf32>, i32 -> vector<8x256xf32>
    %21 = vector.broadcast %3 : vector<1x256xf32> to vector<8x256xf32>
    %22 = arith.mulf %20, %21 : vector<8x256xf32>
    %c1_i32 = arith.constant 1 : i32
    %23 = tpu.dynamic_rotate %10 by %c1_i32 dim 1 : vector<8x256xf32>, i32 -> vector<8x256xf32>
    %24 = vector.broadcast %4 : vector<1x256xf32> to vector<8x256xf32>
    %25 = arith.mulf %23, %24 : vector<8x256xf32>
    %c255_i32 = arith.constant 255 : i32
    %26 = tpu.dynamic_rotate %10 by %c255_i32 dim 1 : vector<8x256xf32>, i32 -> vector<8x256xf32>
    %27 = vector.broadcast %5 : vector<1x256xf32> to vector<8x256xf32>
    %28 = arith.mulf %26, %27 : vector<8x256xf32>
    %c241_i32 = arith.constant 241 : i32
    %29 = tpu.dynamic_rotate %10 by %c241_i32 dim 1 : vector<8x256xf32>, i32 -> vector<8x256xf32>
    %30 = vector.broadcast %6 : vector<1x256xf32> to vector<8x256xf32>
    %31 = arith.mulf %29, %30 : vector<8x256xf32>
    %c240_i32 = arith.constant 240 : i32
    %32 = tpu.dynamic_rotate %10 by %c240_i32 dim 1 : vector<8x256xf32>, i32 -> vector<8x256xf32>
    %33 = vector.broadcast %7 : vector<1x256xf32> to vector<8x256xf32>
    %34 = arith.mulf %32, %33 : vector<8x256xf32>
    %c239_i32 = arith.constant 239 : i32
    %35 = tpu.dynamic_rotate %10 by %c239_i32 dim 1 : vector<8x256xf32>, i32 -> vector<8x256xf32>
    %36 = vector.broadcast %8 : vector<1x256xf32> to vector<8x256xf32>
    %37 = arith.mulf %35, %36 : vector<8x256xf32>
    %38 = tpu.concatenate %16, %19, %22, %25, %10, %28, %31, %34, %37 in 0 : vector<8x256xf32>, vector<8x256xf32>, vector<8x256xf32>, vector<8x256xf32>, vector<8x256xf32>, vector<8x256xf32>, vector<8x256xf32>, vector<8x256xf32>, vector<8x256xf32> -> vector<72x256xf32>
    %39 = arith.truncf %38 : vector<72x256xf32> to vector<72x256xbf16>
    %cst = arith.constant dense<0.000000e+00> : vector<8x256xf32>
    %40 = tpu.matmul %13, %39, %cst {dimension_numbers = #tpu.dot_dimension_numbers<[1], [0], [0], [1], [0, 0, 1, 1], [], []>} : vector<8x72xbf16>, vector<72x256xbf16>, vector<8x256xf32> -> vector<8x256xf32>
    %c0_7 = arith.constant 0 : index
    %c0_8 = arith.constant 0 : index
    %41 = vector.load %arg5[%c0_7, %c0_8] : memref<8x1xf32, #tpu.memory_space<vmem>>, vector<8x1xf32>
    %42 = vector.broadcast %41 : vector<8x1xf32> to vector<8x256xf32>
    %43 = arith.addf %40, %42 : vector<8x256xf32>
    %cst_9 = arith.constant 0.000000e+00 : f32
    %44 = vector.broadcast %cst_9 : f32 to vector<8x256xf32>
    %45 = arith.maximumf %43, %44 : vector<8x256xf32>
    %c0_10 = arith.constant 0 : index
    %c0_11 = arith.constant 0 : index
    %46 = vector.load %arg6[%c0_10, %c0_11] : memref<8x72xbf16, #tpu.memory_space<vmem>>, vector<8x72xbf16>
    %c17_i32_12 = arith.constant 17 : i32
    %47 = tpu.dynamic_rotate %45 by %c17_i32_12 dim 1 : vector<8x256xf32>, i32 -> vector<8x256xf32>
    %48 = vector.broadcast %1 : vector<1x256xf32> to vector<8x256xf32>
    %49 = arith.mulf %47, %48 : vector<8x256xf32>
    %c16_i32_13 = arith.constant 16 : i32
    %50 = tpu.dynamic_rotate %45 by %c16_i32_13 dim 1 : vector<8x256xf32>, i32 -> vector<8x256xf32>
    %51 = vector.broadcast %2 : vector<1x256xf32> to vector<8x256xf32>
    %52 = arith.mulf %50, %51 : vector<8x256xf32>
    %c15_i32_14 = arith.constant 15 : i32
    %53 = tpu.dynamic_rotate %45 by %c15_i32_14 dim 1 : vector<8x256xf32>, i32 -> vector<8x256xf32>
    %54 = vector.broadcast %3 : vector<1x256xf32> to vector<8x256xf32>
    %55 = arith.mulf %53, %54 : vector<8x256xf32>
    %c1_i32_15 = arith.constant 1 : i32
    %56 = tpu.dynamic_rotate %45 by %c1_i32_15 dim 1 : vector<8x256xf32>, i32 -> vector<8x256xf32>
    %57 = vector.broadcast %4 : vector<1x256xf32> to vector<8x256xf32>
    %58 = arith.mulf %56, %57 : vector<8x256xf32>
    %c255_i32_16 = arith.constant 255 : i32
    %59 = tpu.dynamic_rotate %45 by %c255_i32_16 dim 1 : vector<8x256xf32>, i32 -> vector<8x256xf32>
    %60 = vector.broadcast %5 : vector<1x256xf32> to vector<8x256xf32>
    %61 = arith.mulf %59, %60 : vector<8x256xf32>
    %c241_i32_17 = arith.constant 241 : i32
    %62 = tpu.dynamic_rotate %45 by %c241_i32_17 dim 1 : vector<8x256xf32>, i32 -> vector<8x256xf32>
    %63 = vector.broadcast %6 : vector<1x256xf32> to vector<8x256xf32>
    %64 = arith.mulf %62, %63 : vector<8x256xf32>
    %c240_i32_18 = arith.constant 240 : i32
    %65 = tpu.dynamic_rotate %45 by %c240_i32_18 dim 1 : vector<8x256xf32>, i32 -> vector<8x256xf32>
    %66 = vector.broadcast %7 : vector<1x256xf32> to vector<8x256xf32>
    %67 = arith.mulf %65, %66 : vector<8x256xf32>
    %c239_i32_19 = arith.constant 239 : i32
    %68 = tpu.dynamic_rotate %45 by %c239_i32_19 dim 1 : vector<8x256xf32>, i32 -> vector<8x256xf32>
    %69 = vector.broadcast %8 : vector<1x256xf32> to vector<8x256xf32>
    %70 = arith.mulf %68, %69 : vector<8x256xf32>
    %71 = tpu.concatenate %49, %52, %55, %58, %45, %61, %64, %67, %70 in 0 : vector<8x256xf32>, vector<8x256xf32>, vector<8x256xf32>, vector<8x256xf32>, vector<8x256xf32>, vector<8x256xf32>, vector<8x256xf32>, vector<8x256xf32>, vector<8x256xf32> -> vector<72x256xf32>
    %72 = arith.truncf %71 : vector<72x256xf32> to vector<72x256xbf16>
    %cst_20 = arith.constant dense<0.000000e+00> : vector<8x256xf32>
    %73 = tpu.matmul %46, %72, %cst_20 {dimension_numbers = #tpu.dot_dimension_numbers<[1], [0], [0], [1], [0, 0, 1, 1], [], []>} : vector<8x72xbf16>, vector<72x256xbf16>, vector<8x256xf32> -> vector<8x256xf32>
    %c0_21 = arith.constant 0 : index
    %c0_22 = arith.constant 0 : index
    %74 = vector.load %arg7[%c0_21, %c0_22] : memref<8x1xf32, #tpu.memory_space<vmem>>, vector<8x1xf32>
    %75 = vector.broadcast %74 : vector<8x1xf32> to vector<8x256xf32>
    %76 = arith.addf %73, %75 : vector<8x256xf32>
    %cst_23 = arith.constant 0.000000e+00 : f32
    %77 = vector.broadcast %cst_23 : f32 to vector<8x256xf32>
    %78 = arith.maximumf %76, %77 : vector<8x256xf32>
    %79 = tpu.concatenate %12, %78 in 0 : vector<8x256xf32>, vector<8x256xf32> -> vector<16x256xf32>
    %c0_24 = arith.constant 0 : index
    %c0_25 = arith.constant 0 : index
    %80 = vector.load %arg8[%c0_24, %c0_25] : memref<8x144xbf16, #tpu.memory_space<vmem>>, vector<8x144xbf16>
    %c17_i32_26 = arith.constant 17 : i32
    %81 = tpu.dynamic_rotate %79 by %c17_i32_26 dim 1 : vector<16x256xf32>, i32 -> vector<16x256xf32>
    %82 = vector.broadcast %1 : vector<1x256xf32> to vector<16x256xf32>
    %83 = arith.mulf %81, %82 : vector<16x256xf32>
    %c16_i32_27 = arith.constant 16 : i32
    %84 = tpu.dynamic_rotate %79 by %c16_i32_27 dim 1 : vector<16x256xf32>, i32 -> vector<16x256xf32>
    %85 = vector.broadcast %2 : vector<1x256xf32> to vector<16x256xf32>
    %86 = arith.mulf %84, %85 : vector<16x256xf32>
    %c15_i32_28 = arith.constant 15 : i32
    %87 = tpu.dynamic_rotate %79 by %c15_i32_28 dim 1 : vector<16x256xf32>, i32 -> vector<16x256xf32>
    %88 = vector.broadcast %3 : vector<1x256xf32> to vector<16x256xf32>
    %89 = arith.mulf %87, %88 : vector<16x256xf32>
    %c1_i32_29 = arith.constant 1 : i32
    %90 = tpu.dynamic_rotate %79 by %c1_i32_29 dim 1 : vector<16x256xf32>, i32 -> vector<16x256xf32>
    %91 = vector.broadcast %4 : vector<1x256xf32> to vector<16x256xf32>
    %92 = arith.mulf %90, %91 : vector<16x256xf32>
    %c255_i32_30 = arith.constant 255 : i32
    %93 = tpu.dynamic_rotate %79 by %c255_i32_30 dim 1 : vector<16x256xf32>, i32 -> vector<16x256xf32>
    %94 = vector.broadcast %5 : vector<1x256xf32> to vector<16x256xf32>
    %95 = arith.mulf %93, %94 : vector<16x256xf32>
    %c241_i32_31 = arith.constant 241 : i32
    %96 = tpu.dynamic_rotate %79 by %c241_i32_31 dim 1 : vector<16x256xf32>, i32 -> vector<16x256xf32>
    %97 = vector.broadcast %6 : vector<1x256xf32> to vector<16x256xf32>
    %98 = arith.mulf %96, %97 : vector<16x256xf32>
    %c240_i32_32 = arith.constant 240 : i32
    %99 = tpu.dynamic_rotate %79 by %c240_i32_32 dim 1 : vector<16x256xf32>, i32 -> vector<16x256xf32>
    %100 = vector.broadcast %7 : vector<1x256xf32> to vector<16x256xf32>
    %101 = arith.mulf %99, %100 : vector<16x256xf32>
    %c239_i32_33 = arith.constant 239 : i32
    %102 = tpu.dynamic_rotate %79 by %c239_i32_33 dim 1 : vector<16x256xf32>, i32 -> vector<16x256xf32>
    %103 = vector.broadcast %8 : vector<1x256xf32> to vector<16x256xf32>
    %104 = arith.mulf %102, %103 : vector<16x256xf32>
    %105 = tpu.concatenate %83, %86, %89, %92, %79, %95, %98, %101, %104 in 0 : vector<16x256xf32>, vector<16x256xf32>, vector<16x256xf32>, vector<16x256xf32>, vector<16x256xf32>, vector<16x256xf32>, vector<16x256xf32>, vector<16x256xf32>, vector<16x256xf32> -> vector<144x256xf32>
    %106 = arith.truncf %105 : vector<144x256xf32> to vector<144x256xbf16>
    %cst_34 = arith.constant dense<0.000000e+00> : vector<8x256xf32>
    %107 = tpu.matmul %80, %106, %cst_34 {dimension_numbers = #tpu.dot_dimension_numbers<[1], [0], [0], [1], [0, 0, 1, 1], [], []>} : vector<8x144xbf16>, vector<144x256xbf16>, vector<8x256xf32> -> vector<8x256xf32>
    %c0_35 = arith.constant 0 : index
    %c0_36 = arith.constant 0 : index
    %108 = vector.load %arg9[%c0_35, %c0_36] : memref<8x1xf32, #tpu.memory_space<vmem>>, vector<8x1xf32>
    %109 = vector.broadcast %108 : vector<8x1xf32> to vector<8x256xf32>
    %110 = arith.addf %107, %109 : vector<8x256xf32>
    %cst_37 = arith.constant 0.000000e+00 : f32
    %111 = vector.broadcast %cst_37 : f32 to vector<8x256xf32>
    %112 = arith.maximumf %110, %111 : vector<8x256xf32>
    %c0_38 = arith.constant 0 : index
    %c0_39 = arith.constant 0 : index
    %113 = vector.load %arg10[%c0_38, %c0_39] : memref<8x256xf32, #tpu.memory_space<vmem>>, vector<8x256xf32>
    tpu.vector_store %arg10[%c0_38, %c0_39], %112 {strides = array<i32>} : memref<8x256xf32, #tpu.memory_space<vmem>>, vector<8x256xf32>,
    return
  }
  func.func @transform_0(%arg0: i32) -> (i32, i32) {
    %c0_i32 = arith.constant 0 : i32
    %c0_i32_0 = arith.constant 0 : i32
    return %c0_i32, %arg0 : i32, i32
  }
  func.func @transform_1(%arg0: i32) -> (i32, i32) {
    %c0_i32 = arith.constant 0 : i32
    %c0_i32_0 = arith.constant 0 : i32
    return %c0_i32, %arg0 : i32, i32
  }
  func.func @transform_2(%arg0: i32) -> (i32, i32) {
    %c0_i32 = arith.constant 0 : i32
    %c0_i32_0 = arith.constant 0 : i32
    %c0_i32_1 = arith.constant 0 : i32
    return %c0_i32, %c0_i32_0 : i32, i32
  }
  func.func @transform_3(%arg0: i32) -> (i32, i32) {
    %c0_i32 = arith.constant 0 : i32
    %c0_i32_0 = arith.constant 0 : i32
    %c0_i32_1 = arith.constant 0 : i32
    return %c0_i32, %c0_i32_0 : i32, i32
  }
  func.func @transform_4(%arg0: i32) -> (i32, i32) {
    %c0_i32 = arith.constant 0 : i32
    %c0_i32_0 = arith.constant 0 : i32
    %c0_i32_1 = arith.constant 0 : i32
    return %c0_i32, %c0_i32_0 : i32, i32
  }
  func.func @transform_5(%arg0: i32) -> (i32, i32) {
    %c0_i32 = arith.constant 0 : i32
    %c0_i32_0 = arith.constant 0 : i32
    %c0_i32_1 = arith.constant 0 : i32
    return %c0_i32, %c0_i32_0 : i32, i32
  }
  func.func @transform_6(%arg0: i32) -> (i32, i32) {
    %c0_i32 = arith.constant 0 : i32
    %c0_i32_0 = arith.constant 0 : i32
    %c0_i32_1 = arith.constant 0 : i32
    return %c0_i32, %c0_i32_0 : i32, i32
  }
  func.func @transform_7(%arg0: i32) -> (i32, i32) {
    %c0_i32 = arith.constant 0 : i32
    %c0_i32_0 = arith.constant 0 : i32
    %c0_i32_1 = arith.constant 0 : i32
    return %c0_i32, %c0_i32_0 : i32, i32
  }
  func.func @transform_8(%arg0: i32) -> (i32, i32) {
    %c0_i32 = arith.constant 0 : i32
    %c0_i32_0 = arith.constant 0 : i32
    %c0_i32_1 = arith.constant 0 : i32
    return %c0_i32, %c0_i32_0 : i32, i32
  }
  func.func @transform_9(%arg0: i32) -> (i32, i32) {
    %c0_i32 = arith.constant 0 : i32
    %c0_i32_0 = arith.constant 0 : i32
    return %c0_i32, %arg0 : i32, i32
  }
}

</mosaic_0001>

<llo_original>
// kernel: block2_forward_nchw.1
$region0: #{block2_forward_nchw.1}
  #allocation0 [shape = 'u32[]', space=smem, size = 0x4, offset = 0x4, fixed_abs, tag = 'smem constant byte address 0x4 - core index']
  #allocation1 [shape = 'u32[144,128]{1,0:T(1,128)}', space=vmem, size = 0x12000, scoped, tag = 'internal scratch']
  %s0 = inlined_call_operand.vmem [shape: bf16[8,512], index: 0, kind: input, shape index: {}]
  %s1 = inlined_call_operand.vmem [shape: bf16[8,512], index: 1, kind: input, shape index: {}]
  %s2 = inlined_call_operand.vmem [shape: f32[9,256], index: 2, kind: input, shape index: {}]
  %s3 = inlined_call_operand.vmem [shape: bf16[8,72], index: 3, kind: input, shape index: {}]
  %s4 = inlined_call_operand.vmem [shape: f32[8,1], index: 4, kind: input, shape index: {}]
  %s5 = inlined_call_operand.vmem [shape: bf16[8,72], index: 5, kind: input, shape index: {}]
  %s6 = inlined_call_operand.vmem [shape: f32[8,1], index: 6, kind: input, shape index: {}]
  %s7 = inlined_call_operand.vmem [shape: bf16[8,144], index: 7, kind: input, shape index: {}]
  %s8 = inlined_call_operand.vmem [shape: f32[8,1], index: 8, kind: input, shape index: {}]
  %s9 = inlined_call_operand.vmem [shape: f32[8,512], index: 9, kind: output, shape index: {}]
  %s10 = sld [smem:[#allocation0]]
  $region69: #{block2_forward_nchw.1} parent=0
    _
  %s12 = ssub.s32 1, %s10
  %s13 = scalar_select 0, %s12, %s10
  loop: start=0, step=1, limit=4
  $region2: #{block2_forward_nchw.1} parent=0 // loop_pre_header
    _
  $region3: #{block2_forward_nchw.1} parent=0 // loop_header
    %s15 = sphi 0, %s19
    %p16 = scmp.ge.s32.totalorder %s15, 4
    %s25 = sphi 0, %s27
    %s28 = sphi 0, %s25
    %s29 = sphi 0, %s28
    %s45 = sphi 0, %s29
    %s51 = sphi 0, %s53
    %s54 = sphi 0, %s51
    %s55 = sphi 0, %s54
    %s71 = sphi 0, %s55
    %s75 = sphi 0, %s75
    %s77 = sphi 0, %s75
    %s78 = sphi 0, %s77
    %s92 = sphi 0, %s78
    %s96 = sphi 0, %s96
    %s98 = sphi 0, %s96
    %s99 = sphi 0, %s98
    %s113 = sphi 0, %s99
    %s117 = sphi 0, %s117
    %s119 = sphi 0, %s117
    %s120 = sphi 0, %s119
    %s134 = sphi 0, %s120
    %s138 = sphi 0, %s138
    %s140 = sphi 0, %s138
    %s141 = sphi 0, %s140
    %s155 = sphi 0, %s141
    %s159 = sphi 0, %s159
    %s161 = sphi 0, %s159
    %s162 = sphi 0, %s161
    %s176 = sphi 0, %s162
    %s180 = sphi 0, %s180
    %s182 = sphi 0, %s180
    %s183 = sphi 0, %s182
    %s197 = sphi 0, %s183
    %s201 = sphi 0, %s201
    %s203 = sphi 0, %s201
    %s204 = sphi 0, %s203
    %s218 = sphi 0, %s204
    %s224 = sphi 0, %s226
    %s227 = sphi 0, %s224
    %s228 = sphi 0, %s227
    %s244 = sphi 0, %s228
  $region4: #{block2_forward_nchw.1} parent=0 // loop_header_branch
    %18 = sbr.rel (%p16) target = $region8
  $region5: #{block2_forward_nchw.1} parent=0 // loop_body
    %s20 = ssub.s32 %s15, 1
    %s21 = ssub.s32 %s15, 2
    %s22 = sadd.s32 %s15, 1
    %s23 = ssub.s32 %s15, %s22
    %p24 = scmp.eq.s32.totalorder %s23, 0
    %s26 = sadd.s32 %s25, 1
    %s27 = scalar_select %p24, %s25, %s26
    %p30 = pneg %p24
    %p31 = scmp.eq.s32.totalorder %s15, 1
    %p32 = por %p30, %p31
    %p33 = scmp.ne.s32.totalorder %s25, %s28
    %p34 = scmp.eq.s32.totalorder %s15, 0
    %p35 = por %p33, %p34
    %p36 = scmp.ne.s32.totalorder %s25, %s28
    %p37 = scmp.eq.s32.totalorder %s20, 1
    %p38 = por %p36, %p37
    %p39 = scmp.ne.s32.totalorder %s28, %s29
    %p40 = scmp.eq.s32.totalorder %s20, 0
    %p41 = por %p39, %p40
    %p42 = scmp.ne.s32.totalorder %s28, %s29
    %p43 = scmp.eq.s32.totalorder %s21, 1
    %p44 = por %p42, %p43
    %p46 = scmp.ne.s32.totalorder %s29, %s45
    %p47 = scmp.eq.s32.totalorder %s21, 0
    %p48 = por %p46, %p47
    %s49 = ssub.s32 %s15, %s22
    %p50 = scmp.eq.s32.totalorder %s49, 0
    %s52 = sadd.s32 %s51, 1
    %s53 = scalar_select %p50, %s51, %s52
    %p56 = pneg %p50
    %p57 = scmp.eq.s32.totalorder %s15, 1
    %p58 = por %p56, %p57
    %p59 = scmp.ne.s32.totalorder %s51, %s54
    %p60 = scmp.eq.s32.totalorder %s15, 0
    %p61 = por %p59, %p60
    %p62 = scmp.ne.s32.totalorder %s51, %s54
    %p63 = scmp.eq.s32.totalorder %s20, 1
    %p64 = por %p62, %p63
    %p65 = scmp.ne.s32.totalorder %s54, %s55
    %p66 = scmp.eq.s32.totalorder %s20, 0
    %p67 = por %p65, %p66
    %p68 = scmp.ne.s32.totalorder %s54, %s55
    %p69 = scmp.eq.s32.totalorder %s21, 1
    %p70 = por %p68, %p69
    %p72 = scmp.ne.s32.totalorder %s55, %s71
    %p73 = scmp.eq.s32.totalorder %s21, 0
    %p74 = por %p72, %p73
    %s76 = sadd.s32 %s75, 1
    %p79 = scmp.eq.s32.totalorder %s15, 1
    %p80 = scmp.ne.s32.totalorder %s75, %s77
    %p81 = scmp.eq.s32.totalorder %s15, 0
    %p82 = por %p80, %p81
    %p83 = scmp.ne.s32.totalorder %s75, %s77
    %p84 = scmp.eq.s32.totalorder %s20, 1
    %p85 = por %p83, %p84
    %p86 = scmp.ne.s32.totalorder %s77, %s78
    %p87 = scmp.eq.s32.totalorder %s20, 0
    %p88 = por %p86, %p87
    %p89 = scmp.ne.s32.totalorder %s77, %s78
    %p90 = scmp.eq.s32.totalorder %s21, 1
    %p91 = por %p89, %p90
    %p93 = scmp.ne.s32.totalorder %s78, %s92
    %p94 = scmp.eq.s32.totalorder %s21, 0
    %p95 = por %p93, %p94
    %s97 = sadd.s32 %s96, 1
    %p100 = scmp.eq.s32.totalorder %s15, 1
    %p101 = scmp.ne.s32.totalorder %s96, %s98
    %p102 = scmp.eq.s32.totalorder %s15, 0
    %p103 = por %p101, %p102
    %p104 = scmp.ne.s32.totalorder %s96, %s98
    %p105 = scmp.eq.s32.totalorder %s20, 1
    %p106 = por %p104, %p105
    %p107 = scmp.ne.s32.totalorder %s98, %s99
    %p108 = scmp.eq.s32.totalorder %s20, 0
    %p109 = por %p107, %p108
    %p110 = scmp.ne.s32.totalorder %s98, %s99
    %p111 = scmp.eq.s32.totalorder %s21, 1
    %p112 = por %p110, %p111
    %p114 = scmp.ne.s32.totalorder %s99, %s113
    %p115 = scmp.eq.s32.totalorder %s21, 0
    %p116 = por %p114, %p115
    %s118 = sadd.s32 %s117, 1
    %p121 = scmp.eq.s32.totalorder %s15, 1
    %p122 = scmp.ne.s32.totalorder %s117, %s119
    %p123 = scmp.eq.s32.totalorder %s15, 0
    %p124 = por %p122, %p123
    %p125 = scmp.ne.s32.totalorder %s117, %s119
    %p126 = scmp.eq.s32.totalorder %s20, 1
    %p127 = por %p125, %p126
    %p128 = scmp.ne.s32.totalorder %s119, %s120
    %p129 = scmp.eq.s32.totalorder %s20, 0
    %p130 = por %p128, %p129
    %p131 = scmp.ne.s32.totalorder %s119, %s120
    %p132 = scmp.eq.s32.totalorder %s21, 1
    %p133 = por %p131, %p132
    %p135 = scmp.ne.s32.totalorder %s120, %s134
    %p136 = scmp.eq.s32.totalorder %s21, 0
    %p137 = por %p135, %p136
    %s139 = sadd.s32 %s138, 1
    %p142 = scmp.eq.s32.totalorder %s15, 1
    %p143 = scmp.ne.s32.totalorder %s138, %s140
    %p144 = scmp.eq.s32.totalorder %s15, 0
    %p145 = por %p143, %p144
    %p146 = scmp.ne.s32.totalorder %s138, %s140
    %p147 = scmp.eq.s32.totalorder %s20, 1
    %p148 = por %p146, %p147
    %p149 = scmp.ne.s32.totalorder %s140, %s141
    %p150 = scmp.eq.s32.totalorder %s20, 0
    %p151 = por %p149, %p150
    %p152 = scmp.ne.s32.totalorder %s140, %s141
    %p153 = scmp.eq.s32.totalorder %s21, 1
    %p154 = por %p152, %p153
    %p156 = scmp.ne.s32.totalorder %s141, %s155
    %p157 = scmp.eq.s32.totalorder %s21, 0
    %p158 = por %p156, %p157
    %s160 = sadd.s32 %s159, 1
    %p163 = scmp.eq.s32.totalorder %s15, 1
    %p164 = scmp.ne.s32.totalorder %s159, %s161
    %p165 = scmp.eq.s32.totalorder %s15, 0
    %p166 = por %p164, %p165
    %p167 = scmp.ne.s32.totalorder %s159, %s161
    %p168 = scmp.eq.s32.totalorder %s20, 1
    %p169 = por %p167, %p168
    %p170 = scmp.ne.s32.totalorder %s161, %s162
    %p171 = scmp.eq.s32.totalorder %s20, 0
    %p172 = por %p170, %p171
    %p173 = scmp.ne.s32.totalorder %s161, %s162
    %p174 = scmp.eq.s32.totalorder %s21, 1
    %p175 = por %p173, %p174
    %p177 = scmp.ne.s32.totalorder %s162, %s176
    %p178 = scmp.eq.s32.totalorder %s21, 0
    %p179 = por %p177, %p178
    %s181 = sadd.s32 %s180, 1
    %p184 = scmp.eq.s32.totalorder %s15, 1
    %p185 = scmp.ne.s32.totalorder %s180, %s182
    %p186 = scmp.eq.s32.totalorder %s15, 0
    %p187 = por %p185, %p186
    %p188 = scmp.ne.s32.totalorder %s180, %s182
    %p189 = scmp.eq.s32.totalorder %s20, 1
    %p190 = por %p188, %p189
    %p191 = scmp.ne.s32.totalorder %s182, %s183
    %p192 = scmp.eq.s32.totalorder %s20, 0
    %p193 = por %p191, %p192
    %p194 = scmp.ne.s32.totalorder %s182, %s183
    %p195 = scmp.eq.s32.totalorder %s21, 1
    %p196 = por %p194, %p195
    %p198 = scmp.ne.s32.totalorder %s183, %s197
    %p199 = scmp.eq.s32.totalorder %s21, 0
    %p200 = por %p198, %p199
    %s202 = sadd.s32 %s201, 1
    %p205 = scmp.eq.s32.totalorder %s15, 1
    %p206 = scmp.ne.s32.totalorder %s201, %s203
    %p207 = scmp.eq.s32.totalorder %s15, 0
    %p208 = por %p206, %p207
    %p209 = scmp.ne.s32.totalorder %s201, %s203
    %p210 = scmp.eq.s32.totalorder %s20, 1
    %p211 = por %p209, %p210
    %p212 = scmp.ne.s32.totalorder %s203, %s204
    %p213 = scmp.eq.s32.totalorder %s20, 0
    %p214 = por %p212, %p213
    %p215 = scmp.ne.s32.totalorder %s203, %s204
    %p216 = scmp.eq.s32.totalorder %s21, 1
    %p217 = por %p215, %p216
    %p219 = scmp.ne.s32.totalorder %s204, %s218
    %p220 = scmp.eq.s32.totalorder %s21, 0
    %p221 = por %p219, %p220
    %s222 = ssub.s32 %s15, %s22
    %p223 = scmp.eq.s32.totalorder %s222, 0
    %s225 = sadd.s32 %s224, 1
    %s226 = scalar_select %p223, %s224, %s225
    %p229 = pneg %p223
    %p230 = scmp.eq.s32.totalorder %s15, 1
    %p231 = por %p229, %p230
    %p232 = scmp.ne.s32.totalorder %s224, %s227
    %p233 = scmp.eq.s32.totalorder %s15, 0
    %p234 = por %p232, %p233
    %p235 = scmp.ne.s32.totalorder %s224, %s227
    %p236 = scmp.eq.s32.totalorder %s20, 1
    %p237 = por %p235, %p236
    %p238 = scmp.ne.s32.totalorder %s227, %s228
    %p239 = scmp.eq.s32.totalorder %s20, 0
    %p240 = por %p238, %p239
    %p241 = scmp.ne.s32.totalorder %s227, %s228
    %p242 = scmp.eq.s32.totalorder %s21, 1
    %p243 = por %p241, %p242
    %p245 = scmp.ne.s32.totalorder %s228, %s244
    %p246 = scmp.eq.s32.totalorder %s21, 0
    %p247 = por %p245, %p246
    %p248 = scmp.le.s32.totalorder 1, %s15
    %p249 = scmp.lt.s32.totalorder %s15, 3
    %p250 = pnand %p248, %p249
    %p251 = pneg %p250
    // Predicated region
    $region9: #{block2_forward_nchw.1} parent=5 // pred_check
      _
    $region10: #{block2_forward_nchw.1} parent=5 // pred_check_branch
      %253 = sbr.rel (%p250) target = $region12
    $region11: #{block2_forward_nchw.1} parent=5 // pred_region
      %s254 = ssub.s32 %s15, 1
      // Predicated region
      $region13: #{block2_forward_nchw.1} parent=11 // pred_check
        %p255 = pneg %p88
      $region14: #{block2_forward_nchw.1} parent=11 // pred_check_branch
        %257 = sbr.rel (%p255) target = $region16
      $region15: #{block2_forward_nchw.1} parent=11 // pred_region
        _
      $region16: #{block2_forward_nchw.1} parent=11 // pred_fallthru
        _
      // Predicated region
      $region17: #{block2_forward_nchw.1} parent=11 // pred_check
        %p258 = pneg %p109
      $region18: #{block2_forward_nchw.1} parent=11 // pred_check_branch
        %260 = sbr.rel (%p258) target = $region20
      $region19: #{block2_forward_nchw.1} parent=11 // pred_region
        _
      $region20: #{block2_forward_nchw.1} parent=11 // pred_fallthru
        _
      // Predicated region
      $region21: #{block2_forward_nchw.1} parent=11 // pred_check
        %p261 = pneg %p130
      $region22: #{block2_forward_nchw.1} parent=11 // pred_check_branch
        %263 = sbr.rel (%p261) target = $region24
      $region23: #{block2_forward_nchw.1} parent=11 // pred_region
        _
      $region24: #{block2_forward_nchw.1} parent=11 // pred_fallthru
        _
      // Predicated region
      $region25: #{block2_forward_nchw.1} parent=11 // pred_check
        %p264 = pneg %p151
      $region26: #{block2_forward_nchw.1} parent=11 // pred_check_branch
        %266 = sbr.rel (%p264) target = $region28
      $region27: #{block2_forward_nchw.1} parent=11 // pred_region
        _
      $region28: #{block2_forward_nchw.1} parent=11 // pred_fallthru
        _
      // Predicated region
      $region29: #{block2_forward_nchw.1} parent=11 // pred_check
        %p267 = pneg %p172
      $region30: #{block2_forward_nchw.1} parent=11 // pred_check_branch
        %269 = sbr.rel (%p267) target = $region32
      $region31: #{block2_forward_nchw.1} parent=11 // pred_region
        _
      $region32: #{block2_forward_nchw.1} parent=11 // pred_fallthru
        _
      // Predicated region
      $region33: #{block2_forward_nchw.1} parent=11 // pred_check
        %p270 = pneg %p193
      $region34: #{block2_forward_nchw.1} parent=11 // pred_check_branch
        %272 = sbr.rel (%p270) target = $region36
      $region35: #{block2_forward_nchw.1} parent=11 // pred_region
        _
      $region36: #{block2_forward_nchw.1} parent=11 // pred_fallthru
        _
      // Predicated region
      $region37: #{block2_forward_nchw.1} parent=11 // pred_check
        %p273 = pneg %p214
      $region38: #{block2_forward_nchw.1} parent=11 // pred_check_branch
        %275 = sbr.rel (%p273) target = $region40
      $region39: #{block2_forward_nchw.1} parent=11 // pred_region
        _
      $region40: #{block2_forward_nchw.1} parent=11 // pred_fallthru
        _
    $region12: #{block2_forward_nchw.1} parent=5 // pred_fallthru
      _
    %p276 = scmp.lt.s32.totalorder %s15, 2
    // Predicated region
    $region41: #{block2_forward_nchw.1} parent=5 // pred_check
      %p277 = pneg %p276
    $region42: #{block2_forward_nchw.1} parent=5 // pred_check_branch
      %279 = sbr.rel (%p277) target = $region44
    $region43: #{block2_forward_nchw.1} parent=5 // pred_region
      // Predicated region
      $region45: #{block2_forward_nchw.1} parent=43 // pred_check
        %p280 = pneg %p35
      $region46: #{block2_forward_nchw.1} parent=43 // pred_check_branch
        %282 = sbr.rel (%p280) target = $region48
      $region47: #{block2_forward_nchw.1} parent=43 // pred_region
        %s283 = smul.u32 2, %s15
        %p284 = scmp.lt.s32.totalorder %s283, 3
        %s285 = scalar_select %p284, %s283, 3
        %s286 = smul.addr %s285, 4
        %s287 = scalar_lea.vmem %s0, %s286
        %s288 = smul.u32 2, %s15
      $region48: #{block2_forward_nchw.1} parent=43 // pred_fallthru
        _
      // Predicated region
      $region49: #{block2_forward_nchw.1} parent=43 // pred_check
        %p289 = pneg %p61
      $region50: #{block2_forward_nchw.1} parent=43 // pred_check_branch
        %291 = sbr.rel (%p289) target = $region52
      $region51: #{block2_forward_nchw.1} parent=43 // pred_region
        %s292 = smul.u32 2, %s15
        %p293 = scmp.lt.s32.totalorder %s292, 3
        %s294 = scalar_select %p293, %s292, 3
        %s295 = smul.addr %s294, 4
        %s296 = scalar_lea.vmem %s1, %s295
        %s297 = smul.u32 2, %s15
      $region52: #{block2_forward_nchw.1} parent=43 // pred_fallthru
        _
    $region44: #{block2_forward_nchw.1} parent=5 // pred_fallthru
      _
    %p298 = scmp.le.s32.totalorder 1, %s15
    %p299 = scmp.lt.s32.totalorder %s15, 3
    %p300 = pnand %p298, %p299
    %p301 = pneg %p300
    // Predicated region
    $region53: #{block2_forward_nchw.1} parent=5 // pred_check
      _
    $region54: #{block2_forward_nchw.1} parent=5 // pred_check_branch
      %303 = sbr.rel (%p300) target = $region56
    $region55: #{block2_forward_nchw.1} parent=5 // pred_region
      %s304 = ssub.s32 %s15, 1
      %s305 = smul.u32 2, %s20
      %p306 = scmp.lt.s32.totalorder %s305, 3
      %s307 = scalar_select %p306, %s305, 3
      %s308 = smul.addr %s307, 4
      %s309 = scalar_lea.vmem %s0, %s308
      %p310 = pneg %p41
      %p311 = pneg %p38
      %s312 = smul.u32 2, %s20
      %p313 = scmp.lt.s32.totalorder %s312, 3
      %s314 = scalar_select %p313, %s312, 3
      %s315 = smul.addr %s314, 4
      %s316 = scalar_lea.vmem %s1, %s315
      %p317 = pneg %p67
      %p318 = pneg %p64
      %p319 = pneg %p88
      %p320 = pneg %p85
      %p321 = pneg %p109
      %p322 = pneg %p106
      %p323 = pneg %p130
      %p324 = pneg %p127
      %p325 = pneg %p151
      %p326 = pneg %p148
      %p327 = pneg %p172
      %p328 = pneg %p169
      %p329 = pneg %p193
      %p330 = pneg %p190
      %p331 = pneg %p214
      %p332 = pneg %p211
      %p333 = pneg %p240
      %p334 = pneg %p237
      %s335 = smul.u32 2, %s20
      %p336 = scmp.lt.s32.totalorder %s335, 3
      %s337 = scalar_select %p336, %s335, 3
      %s338 = smul.addr %s337, 8
      %s339 = scalar_lea.vmem %s9, %s338
      %s340 = smul.u32 2, %s20
      %p341 = scmp.lt.s32.totalorder %s340, 3
      %s342 = scalar_select %p341, %s340, 3
      %s343 = smul.addr %s342, 4
      %s344 = scalar_lea.vmem %s0, %s343
      %s345 = smul.u32 2, %s20
      %s346 = smul.u32 2, %s20
      %p347 = scmp.lt.s32.totalorder %s346, 3
      %s348 = scalar_select %p347, %s346, 3
      %s349 = smul.addr %s348, 4
      %s350 = scalar_lea.vmem %s1, %s349
      %s351 = smul.u32 2, %s20
      %s352 = smul.u32 2, %s20
      %p353 = scmp.lt.s32.totalorder %s352, 3
      %s354 = scalar_select %p353, %s352, 3
      %s355 = smul.addr %s354, 8
      %s356 = scalar_lea.vmem %s9, %s355
      %s357 = smul.u32 2, %s20
      %v359 = vld [vmem:[%s2] sm:$0xff]
      %v360 = vld [vmem:[%s2 + $0x8] sm:$0xff]
      %v361 = vld [vmem:[%s2 + $0x10] sm:$0x1]
      %v362 = vld [vmem:[%s2 + $0x18] sm:$0x1]
      %v363 = vld [vmem:[%s344] sm:$0xff]
      %v364 = vunpack.c.l.bf16 %v363
      %v365 = vunpack.c.h.bf16 %v363
      %v366 = vld [vmem:[%s350] sm:$0xff]
      %v367 = vunpack.c.l.bf16 %v366
      %v368 = vunpack.c.h.bf16 %v366
      %v369 = vld [vmem:[%s3] sm:$0xf]
      %370 = vrot.lane.b32.xlu0 %v364, 17
      %v371 = vpop.permute.xlu0 %370
      %372 = vrot.lane.b32.xlu0 %v365, 17
      %v373 = vpop.permute.xlu0 %372
      %v374 = vlaneseq
      %v375 = vand.u32 %v374, 127
      %vm376 = vcmp.lt.s32.totalorder %v375, 17
      %v377 = vsel %vm376, %v371, %v373
      %v378 = vsel %vm376, %v373, %v371
      %v379 = vlaneseq
      %v380 = vshrl.u32 %v379, 7
      %v381 = vsub.s32 0, %v380
      %v382 = vrot.slane %v359, %v381
      %v383 = vlaneseq
      %v384 = vshrl.u32 %v383, 7
      %v385 = vsub.s32 0, %v384
      %v386 = vrot.slane %v360, %v385
      %v387 = vmul.f32 %v378, %v382
      %v388 = vmul.f32 %v377, %v386
      %389 = vrot.lane.b32.xlu0 %v364, 16
      %v390 = vpop.permute.xlu0 %389
      %391 = vrot.lane.b32.xlu0 %v365, 16
      %v392 = vpop.permute.xlu0 %391
      %vm393 = vcmp.lt.s32.totalorder %v375, 16
      %v394 = vsel %vm393, %v390, %v392
      %v395 = vsel %vm393, %v392, %v390
      %v396 = vlaneseq
      %v397 = vshrl.u32 %v396, 7
      %v398 = vsub.s32 1, %v397
      %v399 = vrot.slane %v359, %v398
      %v400 = vlaneseq
      %v401 = vshrl.u32 %v400, 7
      %v402 = vsub.s32 1, %v401
      %v403 = vrot.slane %v360, %v402
      %v404 = vmul.f32 %v395, %v399
      %v405 = vmul.f32 %v394, %v403
      %406 = vrot.lane.b32.xlu0 %v364, 15
      %v407 = vpop.permute.xlu0 %406
      %408 = vrot.lane.b32.xlu0 %v365, 15
      %v409 = vpop.permute.xlu0 %408
      %vm410 = vcmp.lt.s32.totalorder %v375, 15
      %v411 = vsel %vm410, %v407, %v409
      %v412 = vsel %vm410, %v409, %v407
      %v413 = vlaneseq
      %v414 = vshrl.u32 %v413, 7
      %v415 = vsub.s32 2, %v414
      %v416 = vrot.slane %v359, %v415
      %v417 = vlaneseq
      %v418 = vshrl.u32 %v417, 7
      %v419 = vsub.s32 2, %v418
      %v420 = vrot.slane %v360, %v419
      %v421 = vmul.f32 %v412, %v416
      %v422 = vmul.f32 %v411, %v420
      %423 = vrot.lane.b32.xlu0 %v364, 1
      %v424 = vpop.permute.xlu0 %423
      %425 = vrot.lane.b32.xlu0 %v365, 1
      %v426 = vpop.permute.xlu0 %425
      %vm427 = vcmp.lt.s32.totalorder %v375, 1
      %v428 = vsel %vm427, %v424, %v426
      %v429 = vsel %vm427, %v426, %v424
      %v430 = vlaneseq
      %v431 = vshrl.u32 %v430, 7
      %v432 = vsub.s32 3, %v431
      %v433 = vrot.slane %v359, %v432
      %v434 = vlaneseq
      %v435 = vshrl.u32 %v434, 7
      %v436 = vsub.s32 3, %v435
      %v437 = vrot.slane %v360, %v436
      %v438 = vmul.f32 %v429, %v433
      %v439 = vmul.f32 %v428, %v437
      %440 = vrot.lane.b32.xlu0 %v364, 127
      %v441 = vpop.permute.xlu0 %440
      %442 = vrot.lane.b32.xlu0 %v365, 127
      %v443 = vpop.permute.xlu0 %442
      %vm444 = vcmp.lt.s32.totalorder %v375, 127
      %v445 = vsel %vm444, %v441, %v443
      %v446 = vsel %vm444, %v443, %v441
      %v447 = vlaneseq
      %v448 = vshrl.u32 %v447, 7
      %v449 = vsub.s32 5, %v448
      %v450 = vrot.slane %v359, %v449
      %v451 = vlaneseq
      %v452 = vshrl.u32 %v451, 7
      %v453 = vsub.s32 5, %v452
      %v454 = vrot.slane %v360, %v453
      %v455 = vmul.f32 %v445, %v450
      %v456 = vmul.f32 %v446, %v454
      %457 = vrot.lane.b32.xlu0 %v364, 113
      %v458 = vpop.permute.xlu0 %457
      %459 = vrot.lane.b32.xlu0 %v365, 113
      %v460 = vpop.permute.xlu0 %459
      %vm461 = vcmp.lt.s32.totalorder %v375, 113
      %v462 = vsel %vm461, %v458, %v460
      %v463 = vsel %vm461, %v460, %v458
      %v464 = vlaneseq
      %v465 = vshrl.u32 %v464, 7
      %v466 = vsub.s32 6, %v465
      %v467 = vrot.slane %v359, %v466
      %v468 = vlaneseq
      %v469 = vshrl.u32 %v468, 7
      %v470 = vsub.s32 6, %v469
      %v471 = vrot.slane %v360, %v470
      %v472 = vmul.f32 %v462, %v467
      %v473 = vmul.f32 %v463, %v471
      %474 = vrot.lane.b32.xlu0 %v364, 112
      %v475 = vpop.permute.xlu0 %474
      %476 = vrot.lane.b32.xlu0 %v365, 112
      %v477 = vpop.permute.xlu0 %476
      %vm478 = vcmp.lt.s32.totalorder %v375, 112
      %v479 = vsel %vm478, %v475, %v477
      %v480 = vsel %vm478, %v477, %v475
      %v481 = vlaneseq
      %v482 = vshrl.u32 %v481, 7
      %v483 = vsub.s32 7, %v482
      %v484 = vrot.slane %v359, %v483
      %v485 = vlaneseq
      %v486 = vshrl.u32 %v485, 7
      %v487 = vsub.s32 7, %v486
      %v488 = vrot.slane %v360, %v487
      %v489 = vmul.f32 %v479, %v484
      %v490 = vmul.f32 %v480, %v488
      %491 = vrot.lane.b32.xlu0 %v364, 111
      %v492 = vpop.permute.xlu0 %491
      %493 = vrot.lane.b32.xlu0 %v365, 111
      %v494 = vpop.permute.xlu0 %493
      %vm495 = vcmp.lt.s32.totalorder %v375, 111
      %v496 = vsel %vm495, %v492, %v494
      %v497 = vsel %vm495, %v494, %v492
      %v498 = vlaneseq
      %v499 = vshrl.u32 %v498, 7
      %v500 = vsub.s32 0, %v499
      %v501 = vrot.slane %v361, %v500
      %v502 = vlaneseq
      %v503 = vshrl.u32 %v502, 7
      %v504 = vsub.s32 0, %v503
      %v505 = vrot.slane %v362, %v504
      %v506 = vmul.f32 %v496, %v501
      %v507 = vmul.f32 %v497, %v505
      %v508 = vpack.c.bf16 %v404, %v387
      %v509 = vpack.c.bf16 %v405, %v388
      %v510 = vpack.c.bf16 %v438, %v421
      %v511 = vpack.c.bf16 %v439, %v422
      %v512 = vpack.c.bf16 %v455, %v364
      %v513 = vpack.c.bf16 %v456, %v365
      %v514 = vpack.c.bf16 %v489, %v472
      %v515 = vpack.c.bf16 %v490, %v473
      %v516 = vpack.c.bf16 %v506, %v506
      %v517 = vpack.c.bf16 %v507, %v507
      %v518 = vld [vmem:[%s4] sm:$0xff]
      %520 = vset.pattern.permute.xlu0 0
      %521 = vperm.xlu0 %520, %v518
      %v522 = vpop.permute.xlu0 %521
      %vm524 = vcmask 588800
      %v526 = vsel %vm524, %v369, 0
      %vm528 = vcmask 1043456
      %v530 = vsel %vm528, %v516, 0
      %v533 = vsel %vm528, %v517, 0
      %535 = vmatprep.subr.bf16.mxu0 %v509
      %536 = vmatpush1.bf16.msra.mxu0 %v508
      %537 = vmatprep.subr.bf16.mxu0 %v511
      %538 = vmatpush1.bf16.msra.mxu0 %v510
      %539 = vmatprep.subr.bf16.mxu0 %v513
      %540 = vmatpush1.bf16.msra.mxu0 %v512
      %541 = vmatprep.subr.bf16.mxu0 %v515
      %542 = vmatpush1.bf16.msra.mxu0 %v514
      %543 = vmatprep.subr.bf16.mxu0 %v533
      %544 = vmatpush1.bf16.msra.mxu0 %v530
      %545 = vmatprep.subr.bf16.mxu0 0
      %546 = vmatpush1.bf16.msra.mxu0 0
      %547 = vmatprep.subr.bf16.mxu0 0
      %548 = vmatpush1.bf16.msra.mxu0 0
      %549 = vmatprep.subr.bf16.mxu0 0
      %550 = vmatpush1.bf16.msra.mxu0 0
      %551 = vmatprep.subr.bf16.mxu0 0
      %552 = vmatpush1.bf16.msra.mxu0 0
      %553 = vmatprep.subr.bf16.mxu0 0
      %554 = vmatpush1.bf16.msra.mxu0 0
      %555 = vmatprep.subr.bf16.mxu0 0
      %556 = vmatpush1.bf16.msra.mxu0 0
      %557 = vmatprep.subr.bf16.mxu0 0
      %558 = vmatpush1.bf16.msra.mxu0 0
      %559 = vmatprep.subr.bf16.mxu0 0
      %560 = vmatpush1.bf16.msra.mxu0 0
      %561 = vmatprep.subr.bf16.mxu0 0
      %562 = vmatpush1.bf16.msra.mxu0 0
      %563 = vmatprep.subr.bf16.mxu0 0
      %564 = vmatpush1.bf16.msra.mxu0 0
      %565 = vmatprep.subr.bf16.mxu0 0
      %566 = vmatpush1.bf16.msra.mxu0 0
      %567 = vmatprep.mubr.bf16.mxu0 0
      %568 = vmatmul.mubr.bf16.gmra.mrb[0].mxu0 %v526
      %v569 = vpop.f32.mrb[0].mxu0
      %v570 = vadd.f32 %v522, %v569
      %v571 = vpop.f32.mrb[0].mxu0
      %v572 = vadd.f32 %v522, %v571
      %v573 = vpop.f32.mrb[0].mxu0
      %v574 = vpop.f32.mrb[0].mxu0
      %575 = vdwg.mxu0
      %v576 = vmax.f32 %v570, 0.0
      %v577 = vmax.f32 %v572, 0.0
      %v578 = vld [vmem:[%s5] sm:$0xf]
      %579 = vrot.lane.b32.xlu0 %v576, 17
      %v580 = vpop.permute.xlu0 %579
      %581 = vrot.lane.b32.xlu0 %v577, 17
      %v582 = vpop.permute.xlu0 %581
      %v583 = vsel %vm376, %v580, %v582
      %v584 = vsel %vm376, %v582, %v580
      %v585 = vmul.f32 %v584, %v382
      %v586 = vmul.f32 %v583, %v386
      %587 = vrot.lane.b32.xlu0 %v576, 16
      %v588 = vpop.permute.xlu0 %587
      %589 = vrot.lane.b32.xlu0 %v577, 16
      %v590 = vpop.permute.xlu0 %589
      %v591 = vsel %vm393, %v588, %v590
      %v592 = vsel %vm393, %v590, %v588
      %v593 = vmul.f32 %v592, %v399
      %v594 = vmul.f32 %v591, %v403
      %595 = vrot.lane.b32.xlu0 %v576, 15
      %v596 = vpop.permute.xlu0 %595
      %597 = vrot.lane.b32.xlu0 %v577, 15
      %v598 = vpop.permute.xlu0 %597
      %v599 = vsel %vm410, %v596, %v598
      %v600 = vsel %vm410, %v598, %v596
      %v601 = vmul.f32 %v600, %v416
      %v602 = vmul.f32 %v599, %v420
      %603 = vrot.lane.b32.xlu0 %v576, 1
      %v604 = vpop.permute.xlu0 %603
      %605 = vrot.lane.b32.xlu0 %v577, 1
      %v606 = vpop.permute.xlu0 %605
      %v607 = vsel %vm427, %v604, %v606
      %v608 = vsel %vm427, %v606, %v604
      %v609 = vmul.f32 %v608, %v433
      %v610 = vmul.f32 %v607, %v437
      %611 = vrot.lane.b32.xlu0 %v576, 127
      %v612 = vpop.permute.xlu0 %611
      %613 = vrot.lane.b32.xlu0 %v577, 127
      %v614 = vpop.permute.xlu0 %613
      %v615 = vsel %vm444, %v612, %v614
      %v616 = vsel %vm444, %v614, %v612
      %v617 = vmul.f32 %v615, %v450
      %v618 = vmul.f32 %v616, %v454
      %619 = vrot.lane.b32.xlu0 %v576, 113
      %v620 = vpop.permute.xlu0 %619
      %621 = vrot.lane.b32.xlu0 %v577, 113
      %v622 = vpop.permute.xlu0 %621
      %v623 = vsel %vm461, %v620, %v622
      %v624 = vsel %vm461, %v622, %v620
      %v625 = vmul.f32 %v623, %v467
      %v626 = vmul.f32 %v624, %v471
      %627 = vrot.lane.b32.xlu0 %v576, 112
      %v628 = vpop.permute.xlu0 %627
      %629 = vrot.lane.b32.xlu0 %v577, 112
      %v630 = vpop.permute.xlu0 %629
      %v631 = vsel %vm478, %v628, %v630
      %v632 = vsel %vm478, %v630, %v628
      %v633 = vmul.f32 %v631, %v484
      %v634 = vmul.f32 %v632, %v488
      %635 = vrot.lane.b32.xlu0 %v576, 111
      %v636 = vpop.permute.xlu0 %635
      %637 = vrot.lane.b32.xlu0 %v577, 111
      %v638 = vpop.permute.xlu0 %637
      %v639 = vsel %vm495, %v636, %v638
      %v640 = vsel %vm495, %v638, %v636
      %v641 = vmul.f32 %v639, %v501
      %v642 = vmul.f32 %v640, %v505
      %v643 = vpack.c.bf16 %v593, %v585
      %v644 = vpack.c.bf16 %v594, %v586
      %v645 = vpack.c.bf16 %v609, %v601
      %v646 = vpack.c.bf16 %v610, %v602
      %v647 = vpack.c.bf16 %v617, %v576
      %v648 = vpack.c.bf16 %v618, %v577
      %v649 = vpack.c.bf16 %v633, %v625
      %v650 = vpack.c.bf16 %v634, %v626
      %v651 = vpack.c.bf16 %v641, %v641
      %v652 = vpack.c.bf16 %v642, %v642
      %v653 = vld [vmem:[%s6] sm:$0xff]
      %655 = vset.pattern.permute.xlu0 0
      %656 = vperm.xlu0 %655, %v653
      %v657 = vpop.permute.xlu0 %656
      %v660 = vsel %vm524, %v578, 0
      %v663 = vsel %vm528, %v651, 0
      %v666 = vsel %vm528, %v652, 0
      %668 = vmatprep.subr.bf16.mxu0 %v644
      %669 = vmatpush1.bf16.msra.mxu0 %v643
      %670 = vmatprep.subr.bf16.mxu0 %v646
      %671 = vmatpush1.bf16.msra.mxu0 %v645
      %672 = vmatprep.subr.bf16.mxu0 %v648
      %673 = vmatpush1.bf16.msra.mxu0 %v647
      %674 = vmatprep.subr.bf16.mxu0 %v650
      %675 = vmatpush1.bf16.msra.mxu0 %v649
      %676 = vmatprep.subr.bf16.mxu0 %v666
      %677 = vmatpush1.bf16.msra.mxu0 %v663
      %678 = vmatprep.subr.bf16.mxu0 0
      %679 = vmatpush1.bf16.msra.mxu0 0
      %680 = vmatprep.subr.bf16.mxu0 0
      %681 = vmatpush1.bf16.msra.mxu0 0
      %682 = vmatprep.subr.bf16.mxu0 0
      %683 = vmatpush1.bf16.msra.mxu0 0
      %684 = vmatprep.subr.bf16.mxu0 0
      %685 = vmatpush1.bf16.msra.mxu0 0
      %686 = vmatprep.subr.bf16.mxu0 0
      %687 = vmatpush1.bf16.msra.mxu0 0
      %688 = vmatprep.subr.bf16.mxu0 0
      %689 = vmatpush1.bf16.msra.mxu0 0
      %690 = vmatprep.subr.bf16.mxu0 0
      %691 = vmatpush1.bf16.msra.mxu0 0
      %692 = vmatprep.subr.bf16.mxu0 0
      %693 = vmatpush1.bf16.msra.mxu0 0
      %694 = vmatprep.subr.bf16.mxu0 0
      %695 = vmatpush1.bf16.msra.mxu0 0
      %696 = vmatprep.subr.bf16.mxu0 0
      %697 = vmatpush1.bf16.msra.mxu0 0
      %698 = vmatprep.subr.bf16.mxu0 0
      %699 = vmatpush1.bf16.msra.mxu0 0
      %700 = vmatprep.mubr.bf16.mxu0 0
      %701 = vmatmul.mubr.bf16.gmra.mrb[0].mxu0 %v660
      %v702 = vpop.f32.mrb[0].mxu0
      %v703 = vadd.f32 %v657, %v702
      %v704 = vpop.f32.mrb[0].mxu0
      %v705 = vadd.f32 %v657, %v704
      %v706 = vpop.f32.mrb[0].mxu0
      %v707 = vpop.f32.mrb[0].mxu0
      %708 = vdwg.mxu0
      %v709 = vmax.f32 %v703, 0.0
      %v710 = vmax.f32 %v705, 0.0
      %v711 = vld [vmem:[%s7] sm:$0xff]
      %712 = vrot.lane.b32.xlu0 %v367, 17
      %v713 = vpop.permute.xlu0 %712
      %714 = vrot.lane.b32.xlu0 %v709, 17
      %v715 = vpop.permute.xlu0 %714
      %716 = vrot.lane.b32.xlu0 %v368, 17
      %v717 = vpop.permute.xlu0 %716
      %718 = vrot.lane.b32.xlu0 %v710, 17
      %v719 = vpop.permute.xlu0 %718
      %v720 = vsel %vm376, %v713, %v717
      %v721 = vsel %vm376, %v715, %v719
      %v722 = vsel %vm376, %v717, %v713
      %v723 = vsel %vm376, %v719, %v715
      %v724 = vmul.f32 %v722, %v382
      %v725 = vmul.f32 %v720, %v386
      %v726 = vmul.f32 %v723, %v382
      %v727 = vmul.f32 %v721, %v386
      %728 = vrot.lane.b32.xlu0 %v367, 16
      %v729 = vpop.permute.xlu0 %728
      %730 = vrot.lane.b32.xlu0 %v709, 16
      %v731 = vpop.permute.xlu0 %730
      %732 = vrot.lane.b32.xlu0 %v368, 16
      %v733 = vpop.permute.xlu0 %732
      %734 = vrot.lane.b32.xlu0 %v710, 16
      %v735 = vpop.permute.xlu0 %734
      %v736 = vsel %vm393, %v729, %v733
      %v737 = vsel %vm393, %v731, %v735
      %v738 = vsel %vm393, %v733, %v729
      %v739 = vsel %vm393, %v735, %v731
      %v740 = vmul.f32 %v738, %v399
      %v741 = vmul.f32 %v736, %v403
      %v742 = vmul.f32 %v739, %v399
      %v743 = vmul.f32 %v737, %v403
      %744 = vrot.lane.b32.xlu0 %v367, 15
      %v745 = vpop.permute.xlu0 %744
      %746 = vrot.lane.b32.xlu0 %v709, 15
      %v747 = vpop.permute.xlu0 %746
      %748 = vrot.lane.b32.xlu0 %v368, 15
      %v749 = vpop.permute.xlu0 %748
      %750 = vrot.lane.b32.xlu0 %v710, 15
      %v751 = vpop.permute.xlu0 %750
      %v752 = vsel %vm410, %v745, %v749
      %v753 = vsel %vm410, %v747, %v751
      %v754 = vsel %vm410, %v749, %v745
      %v755 = vsel %vm410, %v751, %v747
      %v756 = vmul.f32 %v754, %v416
      %v757 = vmul.f32 %v752, %v420
      %v758 = vmul.f32 %v755, %v416
      %v759 = vmul.f32 %v753, %v420
      %760 = vrot.lane.b32.xlu0 %v367, 1
      %v761 = vpop.permute.xlu0 %760
      %762 = vrot.lane.b32.xlu0 %v709, 1
      %v763 = vpop.permute.xlu0 %762
      %764 = vrot.lane.b32.xlu0 %v368, 1
      %v765 = vpop.permute.xlu0 %764
      %766 = vrot.lane.b32.xlu0 %v710, 1
      %v767 = vpop.permute.xlu0 %766
      %v768 = vsel %vm427, %v761, %v765
      %v769 = vsel %vm427, %v763, %v767
      %v770 = vsel %vm427, %v765, %v761
      %v771 = vsel %vm427, %v767, %v763
      %v772 = vmul.f32 %v770, %v433
      %v773 = vmul.f32 %v768, %v437
      %v774 = vmul.f32 %v771, %v433
      %v775 = vmul.f32 %v769, %v437
      %776 = vrot.lane.b32.xlu0 %v367, 127
      %v777 = vpop.permute.xlu0 %776
      %778 = vrot.lane.b32.xlu0 %v709, 127
      %v779 = vpop.permute.xlu0 %778
      %780 = vrot.lane.b32.xlu0 %v368, 127
      %v781 = vpop.permute.xlu0 %780
      %782 = vrot.lane.b32.xlu0 %v710, 127
      %v783 = vpop.permute.xlu0 %782
      %v784 = vsel %vm444, %v777, %v781
      %v785 = vsel %vm444, %v779, %v783
      %v786 = vsel %vm444, %v781, %v777
      %v787 = vsel %vm444, %v783, %v779
      %v788 = vmul.f32 %v784, %v450
      %v789 = vmul.f32 %v786, %v454
      %v790 = vmul.f32 %v785, %v450
      %v791 = vmul.f32 %v787, %v454
      %792 = vrot.lane.b32.xlu0 %v367, 113
      %v793 = vpop.permute.xlu0 %792
      %794 = vrot.lane.b32.xlu0 %v709, 113
      %v795 = vpop.permute.xlu0 %794
      %796 = vrot.lane.b32.xlu0 %v368, 113
      %v797 = vpop.permute.xlu0 %796
      %798 = vrot.lane.b32.xlu0 %v710, 113
      %v799 = vpop.permute.xlu0 %798
      %v800 = vsel %vm461, %v793, %v797
      %v801 = vsel %vm461, %v795, %v799
      %v802 = vsel %vm461, %v797, %v793
      %v803 = vsel %vm461, %v799, %v795
      %v804 = vmul.f32 %v800, %v467
      %v805 = vmul.f32 %v802, %v471
      %v806 = vmul.f32 %v801, %v467
      %v807 = vmul.f32 %v803, %v471
      %808 = vrot.lane.b32.xlu0 %v367, 112
      %v809 = vpop.permute.xlu0 %808
      %810 = vrot.lane.b32.xlu0 %v709, 112
      %v811 = vpop.permute.xlu0 %810
      %812 = vrot.lane.b32.xlu0 %v368, 112
      %v813 = vpop.permute.xlu0 %812
      %814 = vrot.lane.b32.xlu0 %v710, 112
      %v815 = vpop.permute.xlu0 %814
      %v816 = vsel %vm478, %v809, %v813
      %v817 = vsel %vm478, %v811, %v815
      %v818 = vsel %vm478, %v813, %v809
      %v819 = vsel %vm478, %v815, %v811
      %v820 = vmul.f32 %v816, %v484
      %v821 = vmul.f32 %v818, %v488
      %v822 = vmul.f32 %v817, %v484
      %v823 = vmul.f32 %v819, %v488
      %824 = vrot.lane.b32.xlu0 %v367, 111
      %v825 = vpop.permute.xlu0 %824
      %826 = vrot.lane.b32.xlu0 %v709, 111
      %v827 = vpop.permute.xlu0 %826
      %828 = vrot.lane.b32.xlu0 %v368, 111
      %v829 = vpop.permute.xlu0 %828
      %830 = vrot.lane.b32.xlu0 %v710, 111
      %v831 = vpop.permute.xlu0 %830
      %v832 = vsel %vm495, %v825, %v829
      %v833 = vsel %vm495, %v827, %v831
      %v834 = vsel %vm495, %v829, %v825
      %v835 = vsel %vm495, %v831, %v827
      %v836 = vmul.f32 %v832, %v501
      %v837 = vmul.f32 %v834, %v505
      %v838 = vmul.f32 %v833, %v501
      %v839 = vmul.f32 %v835, %v505
      %v840 = vpack.c.bf16 %v726, %v724
      %v841 = vpack.c.bf16 %v727, %v725
      %v842 = vpack.c.bf16 %v742, %v740
      %v843 = vpack.c.bf16 %v743, %v741
      %v844 = vpack.c.bf16 %v758, %v756
      %v845 = vpack.c.bf16 %v759, %v757
      %v846 = vpack.c.bf16 %v774, %v772
      %v847 = vpack.c.bf16 %v775, %v773
      %v848 = vpack.c.bf16 %v709, %v367
      %v849 = vpack.c.bf16 %v710, %v368
      %v850 = vpack.c.bf16 %v790, %v788
      %v851 = vpack.c.bf16 %v791, %v789
      %v852 = vpack.c.bf16 %v806, %v804
      %v853 = vpack.c.bf16 %v807, %v805
      %v854 = vpack.c.bf16 %v822, %v820
      %v855 = vpack.c.bf16 %v823, %v821
      %v856 = vpack.c.bf16 %v838, %v836
      %v857 = vpack.c.bf16 %v839, %v837
      %v858 = vld [vmem:[%s8] sm:$0xff]
      %860 = vset.pattern.permute.xlu0 0
      %861 = vperm.xlu0 %860, %v858
      %v862 = vpop.permute.xlu0 %861
      %v865 = vunpack.c.l.b16 %v711
      %v866 = vunpack.c.h.b16 %v711
      %v867 = vpack.c.b16 %v865, %v865
      %v868 = vpack.c.b16 %v866, %v866
      %vm870 = vcmask 130048
      %v872 = vsel %vm870, %v868, 0
      %874 = vmatprep.subr.bf16.mxu0 %v841
      %875 = vmatpush1.bf16.msra.mxu0 %v840
      %876 = vmatprep.subr.bf16.mxu0 %v843
      %877 = vmatpush1.bf16.msra.mxu0 %v842
      %878 = vmatprep.subr.bf16.mxu0 %v845
      %879 = vmatpush1.bf16.msra.mxu0 %v844
      %880 = vmatprep.subr.bf16.mxu0 %v847
      %881 = vmatpush1.bf16.msra.mxu0 %v846
      %882 = vmatprep.subr.bf16.mxu0 %v849
      %883 = vmatpush1.bf16.msra.mxu0 %v848
      %884 = vmatprep.subr.bf16.mxu0 %v851
      %885 = vmatpush1.bf16.msra.mxu0 %v850
      %886 = vmatprep.subr.bf16.mxu0 %v853
      %887 = vmatpush1.bf16.msra.mxu0 %v852
      %888 = vmatprep.subr.bf16.mxu0 %v855
      %889 = vmatpush1.bf16.msra.mxu0 %v854
      %890 = vmatprep.subr.bf16.mxu0 %v857
      %891 = vmatpush1.bf16.msra.mxu0 %v856
      %892 = vmatprep.subr.bf16.mxu0 0
      %893 = vmatpush1.bf16.msra.mxu0 0
      %894 = vmatprep.subr.bf16.mxu0 0
      %895 = vmatpush1.bf16.msra.mxu0 0
      %896 = vmatprep.subr.bf16.mxu0 0
      %897 = vmatpush1.bf16.msra.mxu0 0
      %898 = vmatprep.subr.bf16.mxu0 0
      %899 = vmatpush1.bf16.msra.mxu0 0
      %900 = vmatprep.subr.bf16.mxu0 0
      %901 = vmatpush1.bf16.msra.mxu0 0
      %902 = vmatprep.subr.bf16.mxu0 0
      %903 = vmatpush1.bf16.msra.mxu0 0
      %904 = vmatprep.subr.bf16.mxu0 0
      %905 = vmatpush1.bf16.msra.mxu0 0
      %906 = vmatprep.mubr.bf16.mxu0 %v872
      %907 = vmatmul.mubr.bf16.gmra.mrb[0].mxu0 %v867
      %v908 = vpop.f32.mrb[0].mxu0
      %v909 = vadd.f32 %v862, %v908
      %v910 = vpop.f32.mrb[0].mxu0
      %v911 = vadd.f32 %v862, %v910
      %v912 = vpop.f32.mrb[0].mxu0
      %v913 = vpop.f32.mrb[0].mxu0
      %914 = vdwg.mxu0
      %v915 = vmax.f32 %v909, 0.0
      %v916 = vmax.f32 %v911, 0.0
      %917 = vst [vmem:[%s356] sm:$0xff] %v915
      %918 = vst [vmem:[%s356 + $0x8] sm:$0xff] %v916
      %s919 = smul.u32 2, %s20
      %p920 = scmp.lt.s32.totalorder %s919, 3
      %s921 = scalar_select %p920, %s919, 3
      %s922 = smul.addr %s921, 8
      %s923 = scalar_lea.vmem %s9, %s922
      // Predicated region
      $region57: #{block2_forward_nchw.1} parent=55 // pred_check
        %p924 = pneg %p237
      $region58: #{block2_forward_nchw.1} parent=55 // pred_check_branch
        %926 = sbr.rel (%p924) target = $region60
      $region59: #{block2_forward_nchw.1} parent=55 // pred_region
        %s927 = smul.u32 2, %s20
      $region60: #{block2_forward_nchw.1} parent=55 // pred_fallthru
        _
    $region56: #{block2_forward_nchw.1} parent=5 // pred_fallthru
      _
    %p928 = scmp.le.s32.totalorder 2, %s15
    // Predicated region
    $region61: #{block2_forward_nchw.1} parent=5 // pred_check
      %p929 = pneg %p928
    $region62: #{block2_forward_nchw.1} parent=5 // pred_check_branch
      %931 = sbr.rel (%p929) target = $region64
    $region63: #{block2_forward_nchw.1} parent=5 // pred_region
      %s932 = ssub.s32 %s15, 2
      // Predicated region
      $region65: #{block2_forward_nchw.1} parent=63 // pred_check
        %p933 = pneg %p243
      $region66: #{block2_forward_nchw.1} parent=63 // pred_check_branch
        %935 = sbr.rel (%p933) target = $region68
      $region67: #{block2_forward_nchw.1} parent=63 // pred_region
        %s936 = smul.u32 2, %s21
        %p937 = scmp.lt.s32.totalorder %s936, 3
        %s938 = scalar_select %p937, %s936, 3
        %s939 = smul.addr %s938, 8
        %s940 = scalar_lea.vmem %s9, %s939
      $region68: #{block2_forward_nchw.1} parent=63 // pred_fallthru
        _
    $region64: #{block2_forward_nchw.1} parent=5 // pred_fallthru
      _
  $region6: #{block2_forward_nchw.1} parent=0 // loop_footer
    %s19 = sadd.s32 1, %s15
  $region7: #{block2_forward_nchw.1} parent=0 // loop_footer_branch
    %14 = sbr.rel target = $region3
  $region8: #{block2_forward_nchw.1} parent=0 // loop_exit
    _

</llo_original>
